<compile_context>
chip_gen: v6e
topology: v6e:2x2x1
jax: 0.10.0
libtpu: 0.0.40
codegen_flags: <defaults>
</compile_context>

<pallas_src>
import jax
import jax.numpy as jnp
from jax import lax
from jax.experimental import pallas as pl
from jax.experimental.pallas import tpu as pltpu


def _round_up(x, m):
    return ((x + m - 1) // m) * m


def _pick_tile(requested, dim, align):
    """Aligned tile size; full extent if the dim fits in one tile (always legal)."""
    requested = _round_up(max(requested, align), align)
    if dim <= requested:
        return dim
    return requested


def _make_kernel(cols, tile_r, tile_k, d_sub, needs_k_mask):
    """Build one (row_tile, support, k_tile) grid-step kernel of relu(support @ feat)."""

    def kernel(sup_ref, feat_ref, out_ref, acc_ref):
        k = pl.program_id(2)
        last_k = pl.num_programs(2) - 1

        @pl.when(k == 0)
        def _():
            acc_ref[...] = jnp.zeros_like(acc_ref)

        def accumulate(sup, feat):
            # bf16 x bf16 -> f32 accumulation on the MXU.
            acc_ref[...] += jnp.dot(sup, feat, preferred_element_type=jnp.float32)

        if not needs_k_mask:
            accumulate(sup_ref[...].astype(jnp.bfloat16),
                       feat_ref[...].astype(jnp.bfloat16))
        else:
            # Interior k tiles: plain accumulate (no masking cost).
            @pl.when(k < last_k)
            def _():
                accumulate(sup_ref[...].astype(jnp.bfloat16),
                           feat_ref[...].astype(jnp.bfloat16))

            # Last (ragged) k tile: zero out-of-range contraction columns on BOTH
            # operands so stale VMEM garbage (possibly NaN/Inf) cannot contaminate
            # the accumulation.
            @pl.when(k == last_k)
            def _():
                valid = cols - k * tile_k  # traced scalar, < tile_k here
                sup = sup_ref[...]
                col_ids = lax.broadcasted_iota(jnp.int32, (tile_r, tile_k), 1)
                sup = jnp.where(col_ids < valid, sup, jnp.zeros_like(sup))
                feat = feat_ref[...]
                row_ids = lax.broadcasted_iota(jnp.int32, (tile_k, d_sub), 0)
                feat = jnp.where(row_ids < valid, feat, jnp.zeros_like(feat))
                accumulate(sup.astype(jnp.bfloat16), feat.astype(jnp.bfloat16))

        @pl.when(k == last_k)
        def _():
            out_ref[...] = jnp.maximum(acc_ref[...], 0.0).astype(out_ref.dtype)

    return kernel


def _support_matmul_relu(supports, feats, *, row_tile=512, k_tile=2048):
    """relu( concat_s(supports[s] @ feats[s], axis=1) ) via a tiled Pallas kernel.

    supports : (S, rows, cols)  densified normalized adjacency per rating level
               (bf16 preferred; f32 accepted and cast per-tile in-kernel)
    feats    : (S, cols, d_sub) already-projected features (X @ W_s), bf16/f32
    returns  : (rows, S * d_sub) f32
    """
    num_support, rows, cols = supports.shape
    s2, cols2, d_sub = feats.shape
    assert s2 == num_support and cols2 == cols

    tile_r = _pick_tile(row_tile, rows, 16)    # sublane-aligned (bf16 packing)
    tile_k = _pick_tile(k_tile, cols, 128)     # lane-aligned contraction tile
    n_r = pl.cdiv(rows, tile_r)
    n_k = pl.cdiv(cols, tile_k)
    needs_k_mask = (cols % tile_k) != 0

    kernel = _make_kernel(cols, tile_r, tile_k, d_sub, needs_k_mask)

    # VMEM budget: double-buffered support tile dominates; cap at 64 MiB (v7x-safe).
    sup_b = jnp.dtype(supports.dtype).itemsize
    ft_b = jnp.dtype(feats.dtype).itemsize
    vmem_est = (2 * tile_r * tile_k * sup_b
                + 2 * tile_k * d_sub * ft_b
                + 3 * tile_r * d_sub * 4)
    vmem_limit = int(min(64 * 1024 * 1024, max(32 * 1024 * 1024, 2 * vmem_est)))

    out = pl.pallas_call(
        kernel,
        out_shape=jax.ShapeDtypeStruct((num_support, rows, d_sub), jnp.float32),
        grid_spec=pltpu.PrefetchScalarGridSpec(
            num_scalar_prefetch=0,
            grid=(n_r, num_support, n_k),
            in_specs=[
                # support[s] row/contraction tile, streamed without any wrapper copy
                pl.BlockSpec((pl.Squeezed(), tile_r, tile_k), lambda r, s, k: (s, r, k)),
                # projected features for support s, contraction tile k (narrow last dim)
                pl.BlockSpec((pl.Squeezed(), tile_k, d_sub), lambda r, s, k: (s, k, 0)),
            ],
            out_specs=pl.BlockSpec((pl.Squeezed(), tile_r, d_sub),
                                   lambda r, s, k: (s, r, 0)),
            scratch_shapes=[pltpu.VMEM((tile_r, d_sub), jnp.float32)],
        ),
        compiler_params=pltpu.CompilerParams(
            dimension_semantics=("parallel", "parallel", "arbitrary"),
            vmem_limit_bytes=vmem_limit,
        ),
        # NOTE: pipeline_mode=pl.Buffered(3) on the support spec is a v7x knob if DMA
        # jitter shows up at 3.2 TB/s; left at the default depth of 2 here.
    )(supports, feats)

    # (S, rows, d_sub) -> (rows, S*d_sub); matches torch.cat(hidden_list, dim=1).
    return out.transpose(1, 0, 2).reshape(rows, num_support * d_sub)


def stack_gcn_encoder(user_supports, item_supports, user_inputs, item_inputs, weight,
                      *, row_tile=512, k_tile=2048):
    """Pallas implementation of StackGCNEncoder.forward (use_bias=False, activation=ReLU)."""
    num_support, input_dim, d_sub = weight.shape
    num_users = user_inputs.shape[0]
    num_items = item_inputs.shape[0]
    assert user_supports.shape == (num_support, num_users, num_items)
    assert item_supports.shape == (num_support, num_items, num_users)
    assert user_inputs.shape == (num_users, input_dim)
    assert item_inputs.shape == (num_items, input_dim)

    # Hoisted tiny projections X @ W_s (negligible FLOPs vs. the support matmuls),
    # stored narrow (d_sub lanes) in bf16 so the per-row-tile re-stream is cheap.
    tmp_u = jnp.einsum("ui,sio->suo", user_inputs, weight).astype(jnp.bfloat16)
    tmp_v = jnp.einsum("vi,sio->svo", item_inputs, weight).astype(jnp.bfloat16)

    # user_hidden_s = user_supports[s] @ tmp_v[s] ; item_hidden_s = item_supports[s] @ tmp_u[s]
    user_out = _support_matmul_relu(user_supports, tmp_v,
                                    row_tile=row_tile, k_tile=k_tile)
    item_out = _support_matmul_relu(item_supports, tmp_u,
                                    row_tile=row_tile, k_tile=k_tile)
    return user_out, item_out


def _reference(user_supports, item_supports, user_inputs, item_inputs, weight):
    """Pure-JAX f32 reference mirroring the PyTorch forward."""
    num_support = weight.shape[0]
    u_h, i_h = [], []
    for i in range(num_support):
        tmp_u = user_inputs @ weight[i]
        tmp_v = item_inputs @ weight[i]
        u_h.append(user_supports[i].astype(jnp.float32) @ tmp_v)
        i_h.append(item_supports[i].astype(jnp.float32) @ tmp_u)
    u = jnp.concatenate(u_h, axis=1)
    v = jnp.concatenate(i_h, axis=1)
    return jax.nn.relu(u), jax.nn.relu(v)


if __name__ == "__main__":
    key = jax.random.PRNGKey(0)
    num_support = 5
    input_dim = 64
    output_dim = 40            # output_dim % num_support == 0
    d_sub = output_dim // num_support
    num_users = 176
    num_items = 288

    k1, k2, k3, k4, k5 = jax.random.split(key, 5)

    # Deterministic init mimicking kaiming_uniform_ on a 3D tensor:
    # fan_in = weight.size(1) * weight.size(2); bound = sqrt(6 / fan_in)
    fan_in = input_dim * d_sub
    bound = (6.0 / fan_in) ** 0.5
    weight = jax.random.uniform(k1, (num_support, input_dim, d_sub),
                                minval=-bound, maxval=bound, dtype=jnp.float32)

    user_inputs = jax.random.normal(k2, (num_users, input_dim), dtype=jnp.float32)
    item_inputs = jax.random.normal(k3, (num_items, input_dim), dtype=jnp.float32)

    # Densified "normalized sparse adjacency" per rating level (non-negative, row-normalized).
    u_adj = jax.random.uniform(k4, (num_support, num_users, num_items), dtype=jnp.float32)
    i_adj = jax.random.uniform(k5, (num_support, num_items, num_users), dtype=jnp.float32)
    # Exercise both supported dtype paths:
    #   user_supports: densified straight into bf16 upstream (preferred 2 B/elem path)
    #   item_supports: left in f32, cast to bf16 per-tile inside the kernel
    user_supports = (u_adj / jnp.sum(u_adj, axis=-1, keepdims=True)).astype(jnp.bfloat16)
    item_supports = i_adj / jnp.sum(i_adj, axis=-1, keepdims=True)

    # Small tiles so the demo exercises multi-row-tile grids, an accumulated k axis,
    # and the ragged-last-k masking path (288 % 128 != 0, 176 % 128 != 0).
    user_out, item_out = stack_gcn_encoder(
        user_supports, item_supports, user_inputs, item_inputs, weight,
        row_tile=16, k_tile=128)
    jax.block_until_ready((user_out, item_out))

    ref_u, ref_i = _reference(user_supports, item_supports, user_inputs, item_inputs, weight)
    assert user_out.shape == (num_users, output_dim)
    assert item_out.shape == (num_items, output_dim)
    # bf16 support/feature operands (f32 accumulation) -> loosened tolerance vs f32 reference.
    assert jnp.allclose(user_out, ref_u, atol=2e-2, rtol=2e-2)
    assert jnp.allclose(item_out, ref_i, atol=2e-2, rtol=2e-2)

    print("KERNEL_OK")
</pallas_src>

<mosaic_0001>
module attributes {stable_mosaic.version = 11 : i64} {
  func.func @kernel(%arg0: i32, %arg1: i32, %arg2: i32, %arg3: memref<1x16x128xbf16, #tpu.memory_space<vmem>>, %arg4: memref<1x128x8xbf16, #tpu.memory_space<vmem>>, %arg5: memref<1x16x8xf32, #tpu.memory_space<vmem>>, %arg6: memref<16x8xf32, #tpu.memory_space<vmem>>) attributes {dimension_semantics = [#tpu.dimension_semantics<parallel>, #tpu.dimension_semantics<parallel>, #tpu.dimension_semantics<arbitrary>], iteration_bounds = array<i64: 11, 5, 3>, scalar_prefetch = 0 : i64, scratch_operands = 1 : i64, tpu.core_type = #tpu.core_type<tc>, window_params = [{transform_indices = @transform_0, window_bounds = array<i64: 1, 16, 128>}, {transform_indices = @transform_1, window_bounds = array<i64: 1, 128, 8>}, {transform_indices = @transform_2, window_bounds = array<i64: 1, 16, 8>}]} {
    %c0_i32 = arith.constant 0 : i32
    %0 = arith.cmpi eq, %arg2, %c0_i32 : i32
    %1 = arith.extui %0 : i1 to i32
    %c0_i32_0 = arith.constant 0 : i32
    %2 = arith.cmpi ne, %1, %c0_i32_0 : i32
    scf.if %2 {
      %cst = arith.constant 0.000000e+00 : f32
      %12 = vector.broadcast %cst : f32 to vector<16x8xf32>
      %c0 = arith.constant 0 : index
      %c0_6 = arith.constant 0 : index
      %13 = vector.load %arg6[%c0, %c0_6] : memref<16x8xf32, #tpu.memory_space<vmem>>, vector<16x8xf32>
      tpu.vector_store %arg6[%c0, %c0_6], %12 {strides = array<i32>} : memref<16x8xf32, #tpu.memory_space<vmem>>, vector<16x8xf32>,
    } else {
    }
    %c2_i32 = arith.constant 2 : i32
    %3 = arith.cmpi slt, %arg2, %c2_i32 : i32
    %4 = arith.extui %3 : i1 to i32
    %c0_i32_1 = arith.constant 0 : i32
    %5 = arith.cmpi ne, %4, %c0_i32_1 : i32
    scf.if %5 {
      %c0 = arith.constant 0 : index
      %c0_6 = arith.constant 0 : index
      %c0_7 = arith.constant 0 : index
      %12 = vector.load %arg3[%c0, %c0_6, %c0_7] : memref<1x16x128xbf16, #tpu.memory_space<vmem>>, vector<1x16x128xbf16>
      %13 = vector.shape_cast %12 : vector<1x16x128xbf16> to vector<16x128xbf16>
      %c0_8 = arith.constant 0 : index
      %c0_9 = arith.constant 0 : index
      %c0_10 = arith.constant 0 : index
      %14 = vector.load %arg4[%c0_8, %c0_9, %c0_10] : memref<1x128x8xbf16, #tpu.memory_space<vmem>>, vector<1x128x8xbf16>
      %15 = vector.shape_cast %14 : vector<1x128x8xbf16> to vector<128x8xbf16>
      %c0_11 = arith.constant 0 : index
      %c0_12 = arith.constant 0 : index
      %16 = vector.load %arg6[%c0_11, %c0_12] : memref<16x8xf32, #tpu.memory_space<vmem>>, vector<16x8xf32>
      %cst = arith.constant dense<0.000000e+00> : vector<16x8xf32>
      %17 = tpu.matmul %13, %15, %cst {dimension_numbers = #tpu.dot_dimension_numbers<[1], [0], [0], [1], [0, 0, 1, 1], [], []>} : vector<16x128xbf16>, vector<128x8xbf16>, vector<16x8xf32> -> vector<16x8xf32>
      %18 = arith.addf %16, %17 : vector<16x8xf32>
      %c0_13 = arith.constant 0 : index
      %c0_14 = arith.constant 0 : index
      %19 = vector.load %arg6[%c0_13, %c0_14] : memref<16x8xf32, #tpu.memory_space<vmem>>, vector<16x8xf32>
      tpu.vector_store %arg6[%c0_13, %c0_14], %18 {strides = array<i32>} : memref<16x8xf32, #tpu.memory_space<vmem>>, vector<16x8xf32>,
    } else {
    }
    %c2_i32_2 = arith.constant 2 : i32
    %6 = arith.cmpi eq, %arg2, %c2_i32_2 : i32
    %7 = arith.extui %6 : i1 to i32
    %c0_i32_3 = arith.constant 0 : i32
    %8 = arith.cmpi ne, %7, %c0_i32_3 : i32
    scf.if %8 {
      %c128_i32 = arith.constant 128 : i32
      %12 = arith.muli %arg2, %c128_i32 : i32
      %c288_i32 = arith.constant 288 : i32
      %13 = arith.subi %c288_i32, %12 : i32
      %c0 = arith.constant 0 : index
      %c0_6 = arith.constant 0 : index
      %c0_7 = arith.constant 0 : index
      %14 = vector.load %arg3[%c0, %c0_6, %c0_7] : memref<1x16x128xbf16, #tpu.memory_space<vmem>>, vector<1x16x128xbf16>
      %15 = vector.shape_cast %14 : vector<1x16x128xbf16> to vector<16x128xbf16>
      %16 = tpu.iota {dimensions = array<i32: 1>} : vector<16x128xi32>
      %17 = vector.broadcast %13 : i32 to vector<16x128xi32>
      %18 = arith.cmpi slt, %16, %17 : vector<16x128xi32>
      %cst = arith.constant 0.000000e+00 : bf16
      %19 = vector.broadcast %cst : bf16 to vector<16x128xbf16>
      %20 = arith.select %18, %15, %19 : vector<16x128xi1>, vector<16x128xbf16>
      %c0_8 = arith.constant 0 : index
      %c0_9 = arith.constant 0 : index
      %c0_10 = arith.constant 0 : index
      %21 = vector.load %arg4[%c0_8, %c0_9, %c0_10] : memref<1x128x8xbf16, #tpu.memory_space<vmem>>, vector<1x128x8xbf16>
      %22 = vector.shape_cast %21 : vector<1x128x8xbf16> to vector<128x8xbf16>
      %23 = tpu.iota {dimensions = array<i32: 0>} : vector<128x8xi32>
      %24 = vector.broadcast %13 : i32 to vector<128x8xi32>
      %25 = arith.cmpi slt, %23, %24 : vector<128x8xi32>
      %cst_11 = arith.constant 0.000000e+00 : bf16
      %26 = vector.broadcast %cst_11 : bf16 to vector<128x8xbf16>
      %27 = arith.select %25, %22, %26 : vector<128x8xi1>, vector<128x8xbf16>
      %c0_12 = arith.constant 0 : index
      %c0_13 = arith.constant 0 : index
      %28 = vector.load %arg6[%c0_12, %c0_13] : memref<16x8xf32, #tpu.memory_space<vmem>>, vector<16x8xf32>
      %cst_14 = arith.constant dense<0.000000e+00> : vector<16x8xf32>
      %29 = tpu.matmul %20, %27, %cst_14 {dimension_numbers = #tpu.dot_dimension_numbers<[1], [0], [0], [1], [0, 0, 1, 1], [], []>} : vector<16x128xbf16>, vector<128x8xbf16>, vector<16x8xf32> -> vector<16x8xf32>
      %30 = arith.addf %28, %29 : vector<16x8xf32>
      %c0_15 = arith.constant 0 : index
      %c0_16 = arith.constant 0 : index
      %31 = vector.load %arg6[%c0_15, %c0_16] : memref<16x8xf32, #tpu.memory_space<vmem>>, vector<16x8xf32>
      tpu.vector_store %arg6[%c0_15, %c0_16], %30 {strides = array<i32>} : memref<16x8xf32, #tpu.memory_space<vmem>>, vector<16x8xf32>,
    } else {
    }
    %c2_i32_4 = arith.constant 2 : i32
    %9 = arith.cmpi eq, %arg2, %c2_i32_4 : i32
    %10 = arith.extui %9 : i1 to i32
    %c0_i32_5 = arith.constant 0 : i32
    %11 = arith.cmpi ne, %10, %c0_i32_5 : i32
    scf.if %11 {
      %c0 = arith.constant 0 : index
      %c0_6 = arith.constant 0 : index
      %12 = vector.load %arg6[%c0, %c0_6] : memref<16x8xf32, #tpu.memory_space<vmem>>, vector<16x8xf32>
      %cst = arith.constant 0.000000e+00 : f32
      %13 = vector.broadcast %cst : f32 to vector<16x8xf32>
      %14 = arith.maximumf %12, %13 : vector<16x8xf32>
      %c0_7 = arith.constant 0 : index
      %c0_8 = arith.constant 0 : index
      %c0_9 = arith.constant 0 : index
      %15 = vector.load %arg5[%c0_7, %c0_8, %c0_9] : memref<1x16x8xf32, #tpu.memory_space<vmem>>, vector<1x16x8xf32>
      %16 = vector.shape_cast %15 : vector<1x16x8xf32> to vector<16x8xf32>
      %17 = vector.shape_cast %14 : vector<16x8xf32> to vector<1x16x8xf32>
      tpu.vector_store %arg5[%c0_7, %c0_8, %c0_9], %17 {strides = array<i32>} : memref<1x16x8xf32, #tpu.memory_space<vmem>>, vector<1x16x8xf32>,
    } else {
    }
    return
  }
  func.func @transform_0(%arg0: i32, %arg1: i32, %arg2: i32) -> (i32, i32, i32) {
    %c0_i32 = arith.constant 0 : i32
    return %arg1, %arg0, %arg2 : i32, i32, i32
  }
  func.func @transform_1(%arg0: i32, %arg1: i32, %arg2: i32) -> (i32, i32, i32) {
    %c0_i32 = arith.constant 0 : i32
    %c0_i32_0 = arith.constant 0 : i32
    return %arg1, %arg2, %c0_i32 : i32, i32, i32
  }
  func.func @transform_2(%arg0: i32, %arg1: i32, %arg2: i32) -> (i32, i32, i32) {
    %c0_i32 = arith.constant 0 : i32
    %c0_i32_0 = arith.constant 0 : i32
    return %arg1, %arg0, %c0_i32 : i32, i32, i32
  }
}

</mosaic_0001>

<llo_original>
// kernel: tpu_custom_call.1
$region0: #{tpu_custom_call.1}
  #allocation0 [shape = 'u32[]', space=smem, size = 0x4, offset = 0x4, fixed_abs, tag = 'smem constant byte address 0x4 - core index']
  #allocation1 [shape = 'u32[144,128]{1,0:T(1,128)}', space=vmem, size = 0x12000, scoped, tag = 'internal scratch']
  #allocation2 [shape = 'f32[16,8]{1,0:T(8,128)}', space=vmem, size = 0x2000, scoped, tag = 'scratch operand']
  %s0 = inlined_call_operand.hbm [shape: bf16[5,176,288], index: 0, kind: input, shape index: {}]
  %s1 = inlined_call_operand.vmem [shape: bf16[5,288,8], index: 1, kind: input, shape index: {}]
  %s2 = inlined_call_operand.vmem [shape: f32[5,176,8], index: 2, kind: output, shape index: {}]
  %s3 = sld [smem:[#allocation0]]
  $region57: #{tpu_custom_call.1} parent=0
    _
  %s5 = ssub.s32 1, %s3
  %s6 = scalar_select 0, %s5, %s3
  $region1: #{tpu_custom_call.1} parent=0
    #allocation3 [shape = 'u8[8192]{0}', space=vmem, size = 0x2000, scoped, tag = 'input window, operand 0']
    #allocation4 [shape = 's32[2]{0}', space=sflag, size = 0x8, scoped, tag = 'scoped memory for tpu_custom_call.1']
    %7 = vsyncpa [#allocation4], 0
    %s8 = scalar_lea.sflag [#allocation4], 1
    %9 = vsyncpa %s8, 0
    loop: start=0, step=1, limit=167
    $region2: #{tpu_custom_call.1} parent=1 // loop_pre_header
      _
    $region3: #{tpu_custom_call.1} parent=1 // loop_header
      %s11 = sphi 0, %s15
      %p12 = scmp.ge.s32.totalorder %s11, 167
      %s18 = sphi 0, %s37
      %s19 = sphi 0, %s33
      %s20 = sphi 0, %s29
      %s21 = sphi 0, %s18
      %s22 = sphi 0, %s19
      %s23 = sphi 0, %s20
      %s24 = sphi 0, %s21
      %s25 = sphi 0, %s22
      %s26 = sphi 0, %s23
      %s44 = sphi 0, %s46
      %s47 = sphi 0, %s44
      %s48 = sphi 0, %s47
      %s64 = sphi 0, %s48
      %s72 = sphi 0, %s74
      %s75 = sphi 0, %s72
      %s76 = sphi 0, %s75
      %s92 = sphi 0, %s76
      %s100 = sphi 0, %s102
      %s103 = sphi 0, %s100
      %s104 = sphi 0, %s103
      %s120 = sphi 0, %s104
    $region4: #{tpu_custom_call.1} parent=1 // loop_header_branch
      %14 = sbr.rel (%p12) target = $region8
    $region5: #{tpu_custom_call.1} parent=1 // loop_body
      %s16 = ssub.s32 %s11, 1
      %s17 = ssub.s32 %s11, 2
      %s27 = sadd.s32 1, %s20
      %p28 = scmp.ge.s32.totalorder %s27, 3
      %s29 = scalar_select %p28, 0, %s27
      %s30 = sadd.s32 1, %s19
      %s31 = scalar_select %p28, %s30, %s19
      %p32 = scmp.ge.s32.totalorder %s31, 5
      %s33 = scalar_select %p32, 0, %s31
      %s34 = sadd.s32 1, %s18
      %s35 = scalar_select %p32, %s34, %s18
      %p36 = scmp.ge.s32.totalorder %s35, 11
      %s37 = scalar_select %p36, 0, %s35
      %s38 = ssub.s32 %s19, %s33
      %s39 = ssub.s32 %s18, %s37
      %s40 = sor.u32 %s38, %s39
      %s41 = ssub.s32 %s20, %s29
      %s42 = sor.u32 %s40, %s41
      %p43 = scmp.eq.s32.totalorder %s42, 0
      %s45 = sadd.s32 %s44, 1
      %s46 = scalar_select %p43, %s44, %s45
      %p49 = pneg %p43
      %p50 = scmp.eq.s32.totalorder %s11, 164
      %p51 = por %p49, %p50
      %p52 = scmp.ne.s32.totalorder %s44, %s47
      %p53 = scmp.eq.s32.totalorder %s11, 0
      %p54 = por %p52, %p53
      %p55 = scmp.ne.s32.totalorder %s44, %s47
      %p56 = scmp.eq.s32.totalorder %s16, 164
      %p57 = por %p55, %p56
      %p58 = scmp.ne.s32.totalorder %s47, %s48
      %p59 = scmp.eq.s32.totalorder %s16, 0
      %p60 = por %p58, %p59
      %p61 = scmp.ne.s32.totalorder %s47, %s48
      %p62 = scmp.eq.s32.totalorder %s17, 164
      %p63 = por %p61, %p62
      %p65 = scmp.ne.s32.totalorder %s48, %s64
      %p66 = scmp.eq.s32.totalorder %s17, 0
      %p67 = por %p65, %p66
      %s68 = ssub.s32 %s19, %s33
      %s69 = ssub.s32 %s20, %s29
      %s70 = sor.u32 %s68, %s69
      %p71 = scmp.eq.s32.totalorder %s70, 0
      %s73 = sadd.s32 %s72, 1
      %s74 = scalar_select %p71, %s72, %s73
      %p77 = pneg %p71
      %p78 = scmp.eq.s32.totalorder %s11, 164
      %p79 = por %p77, %p78
      %p80 = scmp.ne.s32.totalorder %s72, %s75
      %p81 = scmp.eq.s32.totalorder %s11, 0
      %p82 = por %p80, %p81
      %p83 = scmp.ne.s32.totalorder %s72, %s75
      %p84 = scmp.eq.s32.totalorder %s16, 164
      %p85 = por %p83, %p84
      %p86 = scmp.ne.s32.totalorder %s75, %s76
      %p87 = scmp.eq.s32.totalorder %s16, 0
      %p88 = por %p86, %p87
      %p89 = scmp.ne.s32.totalorder %s75, %s76
      %p90 = scmp.eq.s32.totalorder %s17, 164
      %p91 = por %p89, %p90
      %p93 = scmp.ne.s32.totalorder %s76, %s92
      %p94 = scmp.eq.s32.totalorder %s17, 0
      %p95 = por %p93, %p94
      %s96 = ssub.s32 %s19, %s33
      %s97 = ssub.s32 %s18, %s37
      %s98 = sor.u32 %s96, %s97
      %p99 = scmp.eq.s32.totalorder %s98, 0
      %s101 = sadd.s32 %s100, 1
      %s102 = scalar_select %p99, %s100, %s101
      %p105 = pneg %p99
      %p106 = scmp.eq.s32.totalorder %s11, 164
      %p107 = por %p105, %p106
      %p108 = scmp.ne.s32.totalorder %s100, %s103
      %p109 = scmp.eq.s32.totalorder %s11, 0
      %p110 = por %p108, %p109
      %p111 = scmp.ne.s32.totalorder %s100, %s103
      %p112 = scmp.eq.s32.totalorder %s16, 164
      %p113 = por %p111, %p112
      %p114 = scmp.ne.s32.totalorder %s103, %s104
      %p115 = scmp.eq.s32.totalorder %s16, 0
      %p116 = por %p114, %p115
      %p117 = scmp.ne.s32.totalorder %s103, %s104
      %p118 = scmp.eq.s32.totalorder %s17, 164
      %p119 = por %p117, %p118
      %p121 = scmp.ne.s32.totalorder %s104, %s120
      %p122 = scmp.eq.s32.totalorder %s17, 0
      %p123 = por %p121, %p122
      %p124 = scmp.le.s32.totalorder 1, %s11
      %p125 = scmp.lt.s32.totalorder %s11, 166
      %p126 = pnand %p124, %p125
      %p127 = pneg %p126
      // Predicated region
      $region9: #{tpu_custom_call.1} parent=5 // pred_check
        _
      $region10: #{tpu_custom_call.1} parent=5 // pred_check_branch
        %129 = sbr.rel (%p126) target = $region12
      $region11: #{tpu_custom_call.1} parent=5 // pred_region
        %s130 = ssub.s32 %s11, 1
      $region12: #{tpu_custom_call.1} parent=5 // pred_fallthru
        _
      %p131 = scmp.lt.s32.totalorder %s11, 165
      // Predicated region
      $region13: #{tpu_custom_call.1} parent=5 // pred_check
        %p132 = pneg %p131
      $region14: #{tpu_custom_call.1} parent=5 // pred_check_branch
        %134 = sbr.rel (%p132) target = $region16
      $region15: #{tpu_custom_call.1} parent=5 // pred_region
        // Predicated region
        $region17: #{tpu_custom_call.1} parent=15 // pred_check
          %p135 = pneg %p54
        $region18: #{tpu_custom_call.1} parent=15 // pred_check_branch
          %137 = sbr.rel (%p135) target = $region20
        $region19: #{tpu_custom_call.1} parent=15 // pred_region
          %s138 = sand.u32 %s44, 1
          %s139 = scalar_lea.sflag [#allocation4], %s138
          %s140 = sand.u32 %s44, 1
          %s141 = smul.addr %s140, 8
          %s142 = scalar_lea.vmem [#allocation3], %s141
          %s143 = smul.u32 2, %s18
          %s145 = ssub.s32 128, 128
          %146 = vsyncadd %s139, %s145
          %s147 = smul.addr %s143, 3
          %s148 = sadd.s32 %s20, %s147
          %s149 = smul.addr %s19, 66
          %s150 = sadd.s32 %s148, %s149
          %s151 = smul.addr %s150, 64
          %s152 = scalar_lea.hbm %s0, %s151
          %s153 = sshll.u32 %s142, 4
          %s154 = int_to_ptr.vmem [resolvable:$true] %s153
          %159 = dma.hbm_to_vmem [thread:$0]  %s152, 128, %s154, %s139, 192, 64, 4
        $region20: #{tpu_custom_call.1} parent=15 // pred_fallthru
          _
        // Predicated region
        $region21: #{tpu_custom_call.1} parent=15 // pred_check
          %p160 = pneg %p82
        $region22: #{tpu_custom_call.1} parent=15 // pred_check_branch
          %162 = sbr.rel (%p160) target = $region24
        $region23: #{tpu_custom_call.1} parent=15 // pred_region
          %s163 = smul.u32 16, %s20
          %s164 = ssub.s32 36, %s163
          %p165 = scmp.lt.s32.totalorder %s164, 16
          %s166 = scalar_select %p165, %s164, 16
          %s167 = smul.u32 64, %s166
          %p168 = scmp.lt.s32.totalorder %s19, 4
          %s169 = scalar_select %p168, %s19, 4
          %p170 = scmp.lt.s32.totalorder %s163, 35
          %s171 = scalar_select %p170, %s163, 35
          %s172 = smul.addr %s169, 36
          %s173 = sadd.s32 %s171, %s172
          %s174 = smul.addr %s173, 4
          %s175 = scalar_lea.vmem %s1, %s174
          %s176 = smul.u32 16, %s20
          %s177 = ssub.s32 36, %s176
          %p178 = scmp.lt.s32.totalorder %s177, 16
          %s179 = scalar_select %p178, %s177, 16
          %s180 = smul.u32 64, %s179
        $region24: #{tpu_custom_call.1} parent=15 // pred_fallthru
          _
      $region16: #{tpu_custom_call.1} parent=5 // pred_fallthru
        _
      %p181 = scmp.le.s32.totalorder 1, %s11
      %p182 = scmp.lt.s32.totalorder %s11, 166
      %p183 = pnand %p181, %p182
      %p184 = pneg %p183
      // Predicated region
      $region25: #{tpu_custom_call.1} parent=5 // pred_check
        _
      $region26: #{tpu_custom_call.1} parent=5 // pred_check_branch
        %186 = sbr.rel (%p183) target = $region28
      $region27: #{tpu_custom_call.1} parent=5 // pred_region
        %s187 = ssub.s32 %s11, 1
        %s188 = sand.u32 %s47, 1
        %s189 = scalar_lea.sflag [#allocation4], %s188
        %s190 = sand.u32 %s47, 1
        %s191 = smul.addr %s190, 8
        %s192 = scalar_lea.vmem [#allocation3], %s191
        // Predicated region
        $region29: #{tpu_custom_call.1} parent=27 // pred_check
          %p193 = pneg %p60
        $region30: #{tpu_custom_call.1} parent=27 // pred_check_branch
          %195 = sbr.rel (%p193) target = $region32
        $region31: #{tpu_custom_call.1} parent=27 // pred_region
          %196 = dma.done %s189, 128
        $region32: #{tpu_custom_call.1} parent=27 // pred_fallthru
          _
        %s197 = sand.u32 %s47, 1
        %s198 = scalar_lea.sflag [#allocation4], %s197
        %s199 = sand.u32 %s47, 1
        %s200 = smul.addr %s199, 8
        %s201 = scalar_lea.vmem [#allocation3], %s200
        %p202 = pneg %p60
        %p203 = pneg %p57
        %s204 = smul.u32 16, %s23
        %s205 = ssub.s32 36, %s204
        %p206 = scmp.lt.s32.totalorder %s205, 16
        %s207 = scalar_select %p206, %s205, 16
        %s208 = smul.u32 64, %s207
        %p209 = scmp.lt.s32.totalorder %s22, 4
        %s210 = scalar_select %p209, %s22, 4
        %p211 = scmp.lt.s32.totalorder %s204, 35
        %s212 = scalar_select %p211, %s204, 35
        %s213 = smul.addr %s210, 36
        %s214 = sadd.s32 %s212, %s213
        %s215 = smul.addr %s214, 4
        %s216 = scalar_lea.vmem %s1, %s215
        %p217 = pneg %p88
        %p218 = pneg %p85
        %p219 = pneg %p116
        %p220 = pneg %p113
        %s221 = smul.u32 2, %s21
        %p222 = scmp.lt.s32.totalorder %s22, 4
        %s223 = scalar_select %p222, %s22, 4
        %p224 = scmp.lt.s32.totalorder %s221, 21
        %s225 = scalar_select %p224, %s221, 21
        %s226 = smul.addr %s223, 22
        %s227 = sadd.s32 %s225, %s226
        %s228 = smul.addr %s227, 8
        %s229 = scalar_lea.vmem %s2, %s228
        %s230 = smul.u32 2, %s21
        %s231 = smul.u32 16, %s23
        %s232 = ssub.s32 36, %s231
        %p233 = scmp.lt.s32.totalorder %s232, 16
        %s234 = scalar_select %p233, %s232, 16
        %s235 = smul.u32 64, %s234
        %p236 = scmp.lt.s32.totalorder %s22, 4
        %s237 = scalar_select %p236, %s22, 4
        %p238 = scmp.lt.s32.totalorder %s231, 35
        %s239 = scalar_select %p238, %s231, 35
        %s240 = smul.addr %s237, 36
        %s241 = sadd.s32 %s239, %s240
        %s242 = smul.addr %s241, 4
        %s243 = scalar_lea.vmem %s1, %s242
        %s244 = smul.u32 16, %s23
        %s245 = ssub.s32 36, %s244
        %p246 = scmp.lt.s32.totalorder %s245, 16
        %s247 = scalar_select %p246, %s245, 16
        %s248 = smul.u32 64, %s247
        %s249 = smul.u32 2, %s21
        %p250 = scmp.lt.s32.totalorder %s22, 4
        %s251 = scalar_select %p250, %s22, 4
        %p252 = scmp.lt.s32.totalorder %s249, 21
        %s253 = scalar_select %p252, %s249, 21
        %s254 = smul.addr %s251, 22
        %s255 = sadd.s32 %s253, %s254
        %s256 = smul.addr %s255, 8
        %s257 = scalar_lea.vmem %s2, %s256
        %s258 = smul.u32 2, %s21
        %p260 = scmp.eq.s32.totalorder %s23, 0
        // Predicated region
        $region33: #{tpu_custom_call.1} parent=27 // pred_check
          %p261 = pneg %p260
        $region34: #{tpu_custom_call.1} parent=27 // pred_check_branch
          %263 = sbr.rel (%p261) target = $region36
        $region35: #{tpu_custom_call.1} parent=27 // pred_region
          %vm264 = vcmask 64512
          %265 = vst.msk [vmem:[#allocation2] sm:$0xff] %vm264, 0.0
          %266 = vst.msk [vmem:[#allocation2 + $0x8] sm:$0xff] %vm264, 0.0
        $region36: #{tpu_custom_call.1} parent=27 // pred_fallthru
          _
        %p267 = scmp.lt.s32.totalorder %s23, 2
        // Predicated region
        $region37: #{tpu_custom_call.1} parent=27 // pred_check
          %p268 = pneg %p267
        $region38: #{tpu_custom_call.1} parent=27 // pred_check_branch
          %270 = sbr.rel (%p268) target = $region40
        $region39: #{tpu_custom_call.1} parent=27 // pred_region
          %v271 = vld [vmem:[%s192] sm:$0xf]
          %v272 = vld [vmem:[%s192 + $0x4] sm:$0xf]
          %v273 = vld [vmem:[%s243] sm:$0xf]
          %v274 = vld [vmem:[%s243 + $0x4] sm:$0xf]
          %v275 = vld [vmem:[%s243 + $0x8] sm:$0xf]
          %v276 = vld [vmem:[%s243 + $0xc] sm:$0xf]
          %v277 = vld [vmem:[%s243 + $0x10] sm:$0xf]
          %v278 = vld [vmem:[%s243 + $0x14] sm:$0xf]
          %v279 = vld [vmem:[%s243 + $0x18] sm:$0xf]
          %v280 = vld [vmem:[%s243 + $0x1c] sm:$0xf]
          %v281 = vld [vmem:[%s243 + $0x20] sm:$0xf]
          %v282 = vld [vmem:[%s243 + $0x24] sm:$0xf]
          %v283 = vld [vmem:[%s243 + $0x28] sm:$0xf]
          %v284 = vld [vmem:[%s243 + $0x2c] sm:$0xf]
          %v285 = vld [vmem:[%s243 + $0x30] sm:$0xf]
          %v286 = vld [vmem:[%s243 + $0x34] sm:$0xf]
          %v287 = vld [vmem:[%s243 + $0x38] sm:$0xf]
          %v288 = vld [vmem:[%s243 + $0x3c] sm:$0xf]
          %v289 = vld [vmem:[#allocation2] sm:$0xff]
          %v290 = vld [vmem:[#allocation2 + $0x8] sm:$0xff]
          %v293 = vunpack.c.l.b16 %v271
          %v294 = vunpack.c.l.b16 %v272
          %v295 = vpack.c.b16 %v294, %v293
          %v313 = vunpack.c.l.b16 %v273
          %v314 = vunpack.c.l.b16 %v274
          %v315 = vunpack.c.l.b16 %v275
          %v316 = vunpack.c.l.b16 %v276
          %v317 = vunpack.c.l.b16 %v277
          %v318 = vunpack.c.l.b16 %v278
          %v319 = vunpack.c.l.b16 %v279
          %v320 = vunpack.c.l.b16 %v280
          %v321 = vunpack.c.l.b16 %v281
          %v322 = vunpack.c.l.b16 %v282
          %v323 = vunpack.c.l.b16 %v283
          %v324 = vunpack.c.l.b16 %v284
          %v325 = vunpack.c.l.b16 %v285
          %v326 = vunpack.c.l.b16 %v286
          %v327 = vunpack.c.l.b16 %v287
          %v328 = vunpack.c.l.b16 %v288
          %v329 = vpack.c.b16 %v314, %v313
          %v330 = vpack.c.b16 %v316, %v315
          %v331 = vpack.c.b16 %v318, %v317
          %v332 = vpack.c.b16 %v320, %v319
          %v333 = vpack.c.b16 %v322, %v321
          %v334 = vpack.c.b16 %v324, %v323
          %v335 = vpack.c.b16 %v326, %v325
          %v336 = vpack.c.b16 %v328, %v327
          %345 = vmatprep.subr.bf16.mxu0 0
          %346 = vmatpush1.bf16.msra.mxu0 %v336
          %347 = vmatprep.subr.bf16.mxu0 0
          %348 = vmatpush1.bf16.msra.mxu0 %v335
          %349 = vmatprep.subr.bf16.mxu0 0
          %350 = vmatpush1.bf16.msra.mxu0 %v334
          %351 = vmatprep.subr.bf16.mxu0 0
          %352 = vmatpush1.bf16.msra.mxu0 %v333
          %353 = vmatprep.subr.bf16.mxu0 0
          %354 = vmatpush1.bf16.msra.mxu0 %v332
          %355 = vmatprep.subr.bf16.mxu0 0
          %356 = vmatpush1.bf16.msra.mxu0 %v331
          %357 = vmatprep.subr.bf16.mxu0 0
          %358 = vmatpush1.bf16.msra.mxu0 %v330
          %359 = vmatprep.subr.bf16.mxu0 0
          %360 = vmatpush1.bf16.msra.mxu0 %v329
          %361 = vmatprep.subr.bf16.mxu0 0
          %362 = vmatpush2.bf16.msra.mxu0 0
          %363 = vmatprep.subr.bf16.mxu0 0
          %364 = vmatpush2.bf16.msra.mxu0 0
          %365 = vmatprep.subr.bf16.mxu0 0
          %366 = vmatpush2.bf16.msra.mxu0 0
          %367 = vmatprep.subr.bf16.mxu0 0
          %368 = vmatpush2.bf16.msra.mxu0 0
          %369 = vmatprep.subr.bf16.mxu0 0
          %370 = vmatpush2.bf16.msra.mxu0 0
          %371 = vmatprep.subr.bf16.mxu0 0
          %372 = vmatpush2.bf16.msra.mxu0 0
          %373 = vmatprep.subr.bf16.mxu0 0
          %374 = vmatpush2.bf16.msra.mxu0 0
          %375 = vmatprep.subr.bf16.mxu0 0
          %376 = vmatpush2.bf16.msra.mxu0 0
          %377 = vmatprep.mubr.bf16.mxu0 0
          %378 = vmatmul.mubr.bf16.gmra.mxu0 %v295
          %v379 = vpop.f32.mrf.mxu0
          %v380 = vadd.f32 0.0, %v379
          %v381 = vpop.f32.mrf.mxu0
          %v382 = vpop.f32.mrf.mxu0
          %v383 = vadd.f32 0.0, %v382
          %v384 = vpop.f32.mrf.mxu0
          %385 = vdwg.mxu0
          %v386 = vadd.f32 %v289, %v380
          %v387 = vadd.f32 %v290, %v383
          %vm388 = vcmask 64512
          %389 = vst.msk [vmem:[#allocation2] sm:$0xff] %vm388, %v386
          %390 = vst.msk [vmem:[#allocation2 + $0x8] sm:$0xff] %vm388, %v387
        $region40: #{tpu_custom_call.1} parent=27 // pred_fallthru
          _
        %p391 = scmp.eq.s32.totalorder %s23, 2
        // Predicated region
        $region41: #{tpu_custom_call.1} parent=27 // pred_check
          %p392 = pneg %p391
        $region42: #{tpu_custom_call.1} parent=27 // pred_check_branch
          %394 = sbr.rel (%p392) target = $region44
        $region43: #{tpu_custom_call.1} parent=27 // pred_region
          %s395 = smul.u32 %s23, 128
          %s396 = ssub.s32 288, %s395
          %v397 = vld [vmem:[%s192] sm:$0xf]
          %v398 = vld [vmem:[%s192 + $0x4] sm:$0xf]
          %v399 = vlaneseq
          %v400 = vand.u32 %v399, 127
          %v401 = vstv %s396
          %vm402 = vcmp.lt.s32.totalorder %v400, %v401
          %vm403 = vmpackc.low %vm402, %vm402
          %v404 = vsel %vm403, %v397, 0
          %v405 = vsel %vm403, %v398, 0
          %v406 = vld [vmem:[%s243] sm:$0xf]
          %v407 = vld [vmem:[%s243 + $0x4] sm:$0xf]
          %v408 = vld [vmem:[%s243 + $0x8] sm:$0xf]
          %v409 = vld [vmem:[%s243 + $0xc] sm:$0xf]
          %v410 = vld [vmem:[%s243 + $0x10] sm:$0xf]
          %v411 = vld [vmem:[%s243 + $0x14] sm:$0xf]
          %v412 = vld [vmem:[%s243 + $0x18] sm:$0xf]
          %v413 = vld [vmem:[%s243 + $0x1c] sm:$0xf]
          %v414 = vld [vmem:[%s243 + $0x20] sm:$0xf]
          %v415 = vld [vmem:[%s243 + $0x24] sm:$0xf]
          %v416 = vld [vmem:[%s243 + $0x28] sm:$0xf]
          %v417 = vld [vmem:[%s243 + $0x2c] sm:$0xf]
          %v418 = vld [vmem:[%s243 + $0x30] sm:$0xf]
          %v419 = vld [vmem:[%s243 + $0x34] sm:$0xf]
          %v420 = vld [vmem:[%s243 + $0x38] sm:$0xf]
          %v421 = vld [vmem:[%s243 + $0x3c] sm:$0xf]
          %v422 = vlaneseq
          %v423 = vshrl.u32 %v422, 7
          %v424 = vadd.s32 %v423, 8
          %v425 = vadd.s32 %v423, 16
          %v426 = vadd.s32 %v423, 24
          %v427 = vadd.s32 %v423, 32
          %v428 = vadd.s32 %v423, 40
          %v429 = vadd.s32 %v423, 48
          %v430 = vadd.s32 %v423, 56
          %v431 = vadd.s32 %v423, 64
          %v432 = vadd.s32 %v423, 72
          %v433 = vadd.s32 %v423, 80
          %v434 = vadd.s32 %v423, 88
          %v435 = vadd.s32 %v423, 96
          %v436 = vadd.s32 %v423, 104
          %v437 = vadd.s32 %v423, 112
          %v438 = vadd.s32 %v423, 120
          %vm439 = vcmp.lt.s32.totalorder %v423, %v401
          %vm440 = vcmp.lt.s32.totalorder %v424, %v401
          %vm441 = vcmp.lt.s32.totalorder %v425, %v401
          %vm442 = vcmp.lt.s32.totalorder %v426, %v401
          %vm443 = vcmp.lt.s32.totalorder %v427, %v401
          %vm444 = vcmp.lt.s32.totalorder %v428, %v401
          %vm445 = vcmp.lt.s32.totalorder %v429, %v401
          %vm446 = vcmp.lt.s32.totalorder %v430, %v401
          %vm447 = vcmp.lt.s32.totalorder %v431, %v401
          %vm448 = vcmp.lt.s32.totalorder %v432, %v401
          %vm449 = vcmp.lt.s32.totalorder %v433, %v401
          %vm450 = vcmp.lt.s32.totalorder %v434, %v401
          %vm451 = vcmp.lt.s32.totalorder %v435, %v401
          %vm452 = vcmp.lt.s32.totalorder %v436, %v401
          %vm453 = vcmp.lt.s32.totalorder %v437, %v401
          %vm454 = vcmp.lt.s32.totalorder %v438, %v401
          %vm455 = vmpackc.low %vm439, %vm439
          %vm456 = vmpackc.low %vm440, %vm440
          %vm457 = vmpackc.low %vm441, %vm441
          %vm458 = vmpackc.low %vm442, %vm442
          %vm459 = vmpackc.low %vm443, %vm443
          %vm460 = vmpackc.low %vm444, %vm444
          %vm461 = vmpackc.low %vm445, %vm445
          %vm462 = vmpackc.low %vm446, %vm446
          %vm463 = vmpackc.low %vm447, %vm447
          %vm464 = vmpackc.low %vm448, %vm448
          %vm465 = vmpackc.low %vm449, %vm449
          %vm466 = vmpackc.low %vm450, %vm450
          %vm467 = vmpackc.low %vm451, %vm451
          %vm468 = vmpackc.low %vm452, %vm452
          %vm469 = vmpackc.low %vm453, %vm453
          %vm470 = vmpackc.low %vm454, %vm454
          %v471 = vsel %vm455, %v406, 0
          %v472 = vsel %vm456, %v407, 0
          %v473 = vsel %vm457, %v408, 0
          %v474 = vsel %vm458, %v409, 0
          %v475 = vsel %vm459, %v410, 0
          %v476 = vsel %vm460, %v411, 0
          %v477 = vsel %vm461, %v412, 0
          %v478 = vsel %vm462, %v413, 0
          %v479 = vsel %vm463, %v414, 0
          %v480 = vsel %vm464, %v415, 0
          %v481 = vsel %vm465, %v416, 0
          %v482 = vsel %vm466, %v417, 0
          %v483 = vsel %vm467, %v418, 0
          %v484 = vsel %vm468, %v419, 0
          %v485 = vsel %vm469, %v420, 0
          %v486 = vsel %vm470, %v421, 0
          %v487 = vld [vmem:[#allocation2] sm:$0xff]
          %v488 = vld [vmem:[#allocation2 + $0x8] sm:$0xff]
          %v491 = vunpack.c.l.b16 %v404
          %v492 = vunpack.c.l.b16 %v405
          %v493 = vpack.c.b16 %v492, %v491
          %v511 = vunpack.c.l.b16 %v471
          %v512 = vunpack.c.l.b16 %v472
          %v513 = vunpack.c.l.b16 %v473
          %v514 = vunpack.c.l.b16 %v474
          %v515 = vunpack.c.l.b16 %v475
          %v516 = vunpack.c.l.b16 %v476
          %v517 = vunpack.c.l.b16 %v477
          %v518 = vunpack.c.l.b16 %v478
          %v519 = vunpack.c.l.b16 %v479
          %v520 = vunpack.c.l.b16 %v480
          %v521 = vunpack.c.l.b16 %v481
          %v522 = vunpack.c.l.b16 %v482
          %v523 = vunpack.c.l.b16 %v483
          %v524 = vunpack.c.l.b16 %v484
          %v525 = vunpack.c.l.b16 %v485
          %v526 = vunpack.c.l.b16 %v486
          %v527 = vpack.c.b16 %v512, %v511
          %v528 = vpack.c.b16 %v514, %v513
          %v529 = vpack.c.b16 %v516, %v515
          %v530 = vpack.c.b16 %v518, %v517
          %v531 = vpack.c.b16 %v520, %v519
          %v532 = vpack.c.b16 %v522, %v521
          %v533 = vpack.c.b16 %v524, %v523
          %v534 = vpack.c.b16 %v526, %v525
          %543 = vmatprep.subr.bf16.mxu0 0
          %544 = vmatpush1.bf16.msra.mxu0 %v534
          %545 = vmatprep.subr.bf16.mxu0 0
          %546 = vmatpush1.bf16.msra.mxu0 %v533
          %547 = vmatprep.subr.bf16.mxu0 0
          %548 = vmatpush1.bf16.msra.mxu0 %v532
          %549 = vmatprep.subr.bf16.mxu0 0
          %550 = vmatpush1.bf16.msra.mxu0 %v531
          %551 = vmatprep.subr.bf16.mxu0 0
          %552 = vmatpush1.bf16.msra.mxu0 %v530
          %553 = vmatprep.subr.bf16.mxu0 0
          %554 = vmatpush1.bf16.msra.mxu0 %v529
          %555 = vmatprep.subr.bf16.mxu0 0
          %556 = vmatpush1.bf16.msra.mxu0 %v528
          %557 = vmatprep.subr.bf16.mxu0 0
          %558 = vmatpush1.bf16.msra.mxu0 %v527
          %559 = vmatprep.subr.bf16.mxu0 0
          %560 = vmatpush2.bf16.msra.mxu0 0
          %561 = vmatprep.subr.bf16.mxu0 0
          %562 = vmatpush2.bf16.msra.mxu0 0
          %563 = vmatprep.subr.bf16.mxu0 0
          %564 = vmatpush2.bf16.msra.mxu0 0
          %565 = vmatprep.subr.bf16.mxu0 0
          %566 = vmatpush2.bf16.msra.mxu0 0
          %567 = vmatprep.subr.bf16.mxu0 0
          %568 = vmatpush2.bf16.msra.mxu0 0
          %569 = vmatprep.subr.bf16.mxu0 0
          %570 = vmatpush2.bf16.msra.mxu0 0
          %571 = vmatprep.subr.bf16.mxu0 0
          %572 = vmatpush2.bf16.msra.mxu0 0
          %573 = vmatprep.subr.bf16.mxu0 0
          %574 = vmatpush2.bf16.msra.mxu0 0
          %575 = vmatprep.mubr.bf16.mxu0 0
          %576 = vmatmul.mubr.bf16.gmra.mxu0 %v493
          %v577 = vpop.f32.mrf.mxu0
          %v578 = vadd.f32 0.0, %v577
          %v579 = vpop.f32.mrf.mxu0
          %v580 = vpop.f32.mrf.mxu0
          %v581 = vadd.f32 0.0, %v580
          %v582 = vpop.f32.mrf.mxu0
          %583 = vdwg.mxu0
          %v584 = vadd.f32 %v487, %v578
          %v585 = vadd.f32 %v488, %v581
          %vm586 = vcmask 64512
          %587 = vst.msk [vmem:[#allocation2] sm:$0xff] %vm586, %v584
          %588 = vst.msk [vmem:[#allocation2 + $0x8] sm:$0xff] %vm586, %v585
          %v589 = vld [vmem:[#allocation2] sm:$0xff]
          %v590 = vld [vmem:[#allocation2 + $0x8] sm:$0xff]
          %v591 = vmax.f32 %v589, 0.0
          %v592 = vmax.f32 %v590, 0.0
          %593 = vst.msk [vmem:[%s257] sm:$0xff] %vm586, %v591
          %594 = vst.msk [vmem:[%s257 + $0x8] sm:$0xff] %vm586, %v592
        $region44: #{tpu_custom_call.1} parent=27 // pred_fallthru
          _
        %s595 = smul.u32 2, %s21
        %p596 = scmp.lt.s32.totalorder %s22, 4
        %s597 = scalar_select %p596, %s22, 4
        %p598 = scmp.lt.s32.totalorder %s595, 21
        %s599 = scalar_select %p598, %s595, 21
        %s600 = smul.addr %s597, 22
        %s601 = sadd.s32 %s599, %s600
        %s602 = smul.addr %s601, 8
        %s603 = scalar_lea.vmem %s2, %s602
        // Predicated region
        $region45: #{tpu_custom_call.1} parent=27 // pred_check
          %p604 = pneg %p113
        $region46: #{tpu_custom_call.1} parent=27 // pred_check_branch
          %606 = sbr.rel (%p604) target = $region48
        $region47: #{tpu_custom_call.1} parent=27 // pred_region
          %s607 = smul.u32 2, %s21
        $region48: #{tpu_custom_call.1} parent=27 // pred_fallthru
          _
      $region28: #{tpu_custom_call.1} parent=5 // pred_fallthru
        _
      %p608 = scmp.le.s32.totalorder 2, %s11
      // Predicated region
      $region49: #{tpu_custom_call.1} parent=5 // pred_check
        %p609 = pneg %p608
      $region50: #{tpu_custom_call.1} parent=5 // pred_check_branch
        %611 = sbr.rel (%p609) target = $region52
      $region51: #{tpu_custom_call.1} parent=5 // pred_region
        %s612 = ssub.s32 %s11, 2
        // Predicated region
        $region53: #{tpu_custom_call.1} parent=51 // pred_check
          %p613 = pneg %p119
        $region54: #{tpu_custom_call.1} parent=51 // pred_check_branch
          %615 = sbr.rel (%p613) target = $region56
        $region55: #{tpu_custom_call.1} parent=51 // pred_region
          %s616 = smul.u32 2, %s24
          %p617 = scmp.lt.s32.totalorder %s25, 4
          %s618 = scalar_select %p617, %s25, 4
          %p619 = scmp.lt.s32.totalorder %s616, 21
          %s620 = scalar_select %p619, %s616, 21
          %s621 = smul.addr %s618, 22
          %s622 = sadd.s32 %s620, %s621
          %s623 = smul.addr %s622, 8
          %s624 = scalar_lea.vmem %s2, %s623
        $region56: #{tpu_custom_call.1} parent=51 // pred_fallthru
          _
      $region52: #{tpu_custom_call.1} parent=5 // pred_fallthru
        _
    $region6: #{tpu_custom_call.1} parent=1 // loop_footer
      %s15 = sadd.s32 1, %s11
    $region7: #{tpu_custom_call.1} parent=1 // loop_footer_branch
      %10 = sbr.rel target = $region3
    $region8: #{tpu_custom_call.1} parent=1 // loop_exit
      _
    %625 = vsyncpa [#allocation4], 1
    %s626 = scalar_lea.sflag [#allocation4], 1
    %627 = vsyncpa %s626, 1

</llo_original>
